<compile_context>
chip_gen: v5e
topology: v5e:2x2
jax: 0.10.0
libtpu: 0.0.40
codegen_flags: <defaults>
</compile_context>

<pallas_src>
import functools
import numpy as np
import jax
import jax.numpy as jnp
from jax.experimental import pallas as pl
from jax.experimental.pallas import tpu as pltpu

# bf16 MXU operands / f32 accumulation.  Set to jnp.float32 for exact-f32 parity.
MXU_DTYPE = jnp.bfloat16


# -----------------------------------------------------------------------------
# block-size helper
# -----------------------------------------------------------------------------
def _pick_block(n, target, granule=8):
    """Largest block <= target that divides n and is a multiple of `granule`
    (last-two-dims tiling rule).  Falls back to the full extent (always legal).
    When the block would cover the whole axis, split it in two (if legal and
    not oversized) so the grid has >= 2 steps and both v7x TensorCores work."""
    if n % granule != 0:
        return n                      # only the full extent is guaranteed legal
    cap = min(target, n)
    b = (cap // granule) * granule
    while b >= granule and n % b != 0:
        b -= granule
    if b < granule:
        b = n
    if b == n and n <= 2 * target and n % (2 * granule) == 0:
        b = n // 2                    # grid >= 2: keep both v7x cores busy
    return b


# -----------------------------------------------------------------------------
# input projections
# -----------------------------------------------------------------------------
def _linear_tanh_kernel(x_ref, w_ref, b_ref, o_ref):
    o_ref[...] = jnp.tanh(
        jnp.dot(x_ref[...].astype(MXU_DTYPE), w_ref[...].astype(MXU_DTYPE),
                preferred_element_type=jnp.float32)
        + b_ref[...]
    )


def pallas_linear_tanh(x, w, b, *, target_rows=1024):
    """y = tanh(x @ w + b).  x:[N,Fin] w:[Fin,Fout] b:[Fout]."""
    n, f_in = x.shape
    f_out = w.shape[1]
    br = _pick_block(n, target_rows, 8)
    return pl.pallas_call(
        _linear_tanh_kernel,
        out_shape=jax.ShapeDtypeStruct((n, f_out), jnp.float32),
        grid=(n // br,),
        in_specs=[
            pl.BlockSpec((br, f_in), lambda i: (i, 0)),
            pl.BlockSpec((f_in, f_out), lambda i: (0, 0)),
            pl.BlockSpec((1, f_out), lambda i: (0, 0)),
        ],
        out_specs=pl.BlockSpec((br, f_out), lambda i: (i, 0)),
        compiler_params=pltpu.CompilerParams(dimension_semantics=("parallel",)),
    )(x, w, b.reshape(1, f_out))


def _pin_proj_kernel(x_ref, w_ref, b_ref, wew_ref, bew_ref, o_ref):
    """hp = tanh(x @ W + b); edge_weight = tanh(<hp, w_ew> + b_ew).
    The edge weight is packed as the LAST lane column of the output so the
    kernel issues a single lane-dense store instead of a width-1 masked one."""
    hp = jnp.tanh(
        jnp.dot(x_ref[...].astype(MXU_DTYPE), w_ref[...].astype(MXU_DTYPE),
                preferred_element_type=jnp.float32)
        + b_ref[...]
    )
    ew = jnp.tanh(jnp.sum(hp * wew_ref[...], axis=-1, keepdims=True) + bew_ref[...])
    o_ref[...] = jnp.concatenate([hp, ew], axis=-1)                 # [br, Hp+1]


def pin_projection_and_edge_weight(x, w, b, w_ew, b_ew, *, target_rows=1024):
    """Returns hpe:[P, Hp+1] = concat(hidden_pin_feat, edge_weight)."""
    n, f_in = x.shape
    f_out = w.shape[1]
    br = _pick_block(n, target_rows, 8)
    return pl.pallas_call(
        _pin_proj_kernel,
        out_shape=jax.ShapeDtypeStruct((n, f_out + 1), jnp.float32),
        grid=(n // br,),
        in_specs=[
            pl.BlockSpec((br, f_in), lambda i: (i, 0)),
            pl.BlockSpec((f_in, f_out), lambda i: (0, 0)),
            pl.BlockSpec((1, f_out), lambda i: (0, 0)),
            pl.BlockSpec((1, f_out), lambda i: (0, 0)),
            pl.BlockSpec((1, 1), lambda i: (0, 0)),
        ],
        out_specs=pl.BlockSpec((br, f_out + 1), lambda i: (i, 0)),
        compiler_params=pltpu.CompilerParams(dimension_semantics=("parallel",)),
    )(x, w, b.reshape(1, f_out), w_ew.reshape(1, f_out), b_ew.reshape(1, 1))


# -----------------------------------------------------------------------------
# 'pins' relation: fused QKV projection + multi-head hyper-edge attention
# -----------------------------------------------------------------------------
def _hyper_attn_kernel(src_ref, pin_ref, wsrc_ref, wpin_ref, b_ref, sel_ref,
                       o_ref, *, fanin, hidden):
    """One block of tn nets (tn*fanin contiguous pins).

    qkv = src @ W_src + pin @ W_pin + b          (MXU, M = tn*fanin, N = 3H)
    For each net: multi-head attention over its fanin pins, mean over pins.

    All heads at once: S[n,f,g,c] = q[n,f,c] * k[n,g,c]  (VPU outer product),
    then ONE matmul with the head-selector SEL[c,d] (=scale iff head(c)==head(d))
    leaves the per-head score replicated across that head's lanes -> softmax,
    mean-over-queries and P.V are all dense 32-lane VPU/EUP math with sublane
    reductions; no per-head slicing, no batched 8x8x8 MXU einsums.
    """
    qkv = (
        jnp.dot(src_ref[...].astype(MXU_DTYPE), wsrc_ref[...].astype(MXU_DTYPE),
                preferred_element_type=jnp.float32)
        + jnp.dot(pin_ref[...].astype(MXU_DTYPE), wpin_ref[...].astype(MXU_DTYPE),
                  preferred_element_type=jnp.float32)
        + b_ref[...]
    )                                                               # [tn*F, 3H]
    tn = qkv.shape[0] // fanin
    x = qkv.reshape(tn, fanin, 3 * hidden)
    q = x[:, :, 0 * hidden:1 * hidden]                              # [tn, F, H]
    k = x[:, :, 1 * hidden:2 * hidden]
    v = x[:, :, 2 * hidden:3 * hidden]

    # head-replicated scores (scale folded into SEL)
    s_outer = q[:, :, None, :] * k[:, None, :, :]                   # [tn, F, G, H]
    s = jnp.dot(s_outer.reshape(tn * fanin * fanin, hidden), sel_ref[...],
                preferred_element_type=jnp.float32)
    s = s.reshape(tn, fanin, fanin, hidden)                         # [tn, F, G, H]

    # softmax over keys g (axis=2); probabilities stay f32
    s = s - jnp.max(s, axis=2, keepdims=True)
    p = jnp.exp(s)
    p = p * pl.reciprocal(jnp.sum(p, axis=2, keepdims=True), approx=True)

    # mean over queries f folded into P.V:  out[n,c] = sum_g mean_f(p)[n,g,c] * v[n,g,c]
    pbar = jnp.mean(p, axis=1)                                      # [tn, G, H]
    o_ref[...] = jnp.sum(pbar * v, axis=1)                          # [tn, H]


def hyperedge_conv(src, pin, w_src, w_pin, b_qkv, sel, *, n_net, fanin, hidden,
                   target_nets=64):
    """src:[P,Hc] (gathered cell feats per pin), pin:[P,Hp+1] -> net feats [N_net,H]."""
    _, hcf = src.shape
    hpf = pin.shape[1]
    three_h = w_src.shape[1]
    tn = _pick_block(n_net, target_nets, 8)
    kernel = functools.partial(_hyper_attn_kernel, fanin=fanin, hidden=hidden)
    return pl.pallas_call(
        kernel,
        out_shape=jax.ShapeDtypeStruct((n_net, hidden), jnp.float32),
        grid=(n_net // tn,),
        in_specs=[
            pl.BlockSpec((tn * fanin, hcf), lambda i: (i, 0)),
            pl.BlockSpec((tn * fanin, hpf), lambda i: (i, 0)),
            pl.BlockSpec((hcf, three_h), lambda i: (0, 0)),
            pl.BlockSpec((hpf, three_h), lambda i: (0, 0)),
            pl.BlockSpec((1, three_h), lambda i: (0, 0)),
            pl.BlockSpec((hidden, hidden), lambda i: (0, 0)),
        ],
        out_specs=pl.BlockSpec((tn, hidden), lambda i: (i, 0)),
        compiler_params=pltpu.CompilerParams(dimension_semantics=("parallel",)),
    )(src, pin, w_src, w_pin, b_qkv, sel)


# -----------------------------------------------------------------------------
# 'pinned' relation: SAGEConv('mean') with edge weights
# -----------------------------------------------------------------------------
def _sage_kernel(self_ref, neigh_ref, ew_ref, wself_ref, wneigh_ref, b_ref, o_ref):
    """out = h_self @ W_self + mean_j(ew_j * h_neigh_j) @ W_neigh + bias."""
    agg = jnp.mean(neigh_ref[...] * ew_ref[...], axis=1)            # [TC, Hn]
    o_ref[...] = (
        jnp.dot(self_ref[...].astype(MXU_DTYPE), wself_ref[...].astype(MXU_DTYPE),
                preferred_element_type=jnp.float32)
        + jnp.dot(agg.astype(MXU_DTYPE), wneigh_ref[...].astype(MXU_DTYPE),
                  preferred_element_type=jnp.float32)
        + b_ref[...]
    )


def sage_conv(h_self, neigh, ew, w_self, w_neigh, bias, *, target_rows=1024):
    n_cell, hcf = h_self.shape
    _, dc, hnf = neigh.shape
    tc = _pick_block(n_cell, target_rows, 8)
    return pl.pallas_call(
        _sage_kernel,
        out_shape=jax.ShapeDtypeStruct((n_cell, hcf), jnp.float32),
        grid=(n_cell // tc,),
        in_specs=[
            pl.BlockSpec((tc, hcf), lambda i: (i, 0)),
            pl.BlockSpec((tc, dc, hnf), lambda i: (i, 0, 0)),
            pl.BlockSpec((tc, dc, 1), lambda i: (i, 0, 0)),
            pl.BlockSpec((hcf, hcf), lambda i: (0, 0)),
            pl.BlockSpec((hnf, hcf), lambda i: (0, 0)),
            pl.BlockSpec((1, hcf), lambda i: (0, 0)),
        ],
        out_specs=pl.BlockSpec((tc, hcf), lambda i: (i, 0)),
        compiler_params=pltpu.CompilerParams(dimension_semantics=("parallel",)),
    )(h_self, neigh, ew, w_self, w_neigh, bias.reshape(1, hcf))


# -----------------------------------------------------------------------------
# 'points-to' readout: fused distance + angle heads, edges on the LANE axis
# -----------------------------------------------------------------------------
def _readout_kernel(pair_t_ref, bound_t_ref, wda_t_ref, bda_ref, o_ref):
    """raw = W_da^T @ pair^T -> [2, TE] (row 0 = dis head, row 1 = angle head)."""
    raw = (
        jnp.dot(wda_t_ref[...].astype(MXU_DTYPE), pair_t_ref[...].astype(MXU_DTYPE),
                preferred_element_type=jnp.float32)
        + bda_ref[...]
    )                                                               # [2, TE]
    edge_dis_ = jnp.exp(-2.0 + 15.0 * jnp.tanh(raw[0:1, :]))        # [1, TE]
    edge_angle = jnp.tanh(raw[1:2, :]) * 4.0                        # [1, TE]
    eps = 1e-4
    bx = bound_t_ref[0:1, :]
    by = bound_t_ref[1:2, :]
    tmp = jnp.minimum(
        jnp.abs(bx / (jnp.cos(edge_angle * np.pi) + eps)),
        jnp.abs(by / (jnp.sin(edge_angle * np.pi) + eps)),
    )
    o_ref[...] = jnp.concatenate([edge_dis_ + tmp, edge_angle], axis=0)   # [2, TE]


def edge_readout(pair_t, bound_t, w_da_t, b_da, *, target_lanes=2048):
    two_hc, e = pair_t.shape
    te = _pick_block(e, target_lanes, 128)
    out = pl.pallas_call(
        _readout_kernel,
        out_shape=jax.ShapeDtypeStruct((2, e), jnp.float32),
        grid=(e // te,),
        in_specs=[
            pl.BlockSpec((two_hc, te), lambda i: (0, i)),
            pl.BlockSpec((2, te), lambda i: (0, i)),
            pl.BlockSpec((2, two_hc), lambda i: (0, 0)),
            pl.BlockSpec((2, 1), lambda i: (0, 0)),
        ],
        out_specs=pl.BlockSpec((2, te), lambda i: (0, i)),
        compiler_params=pltpu.CompilerParams(dimension_semantics=("parallel",)),
    )(pair_t, bound_t, w_da_t, b_da)
    return out[0], out[1]


# -----------------------------------------------------------------------------
# Parameters (deterministic, PyTorch-Linear-like uniform init).  Q/K/V and the
# dis/angle readout heads are fused at init; the QKV pin weight carries one
# extra ZERO row so the packed edge-weight lane of hpe is ignored exactly.
# -----------------------------------------------------------------------------
def _lin_init(key, f_in, f_out):
    s = 1.0 / np.sqrt(f_in)
    kw, kb = jax.random.split(key)
    w = jax.random.uniform(kw, (f_in, f_out), jnp.float32, -s, s)
    b = jax.random.uniform(kb, (f_out,), jnp.float32, -s, s)
    return w, b


def init_params(key, raw_cell, raw_net, raw_pin, hc, hn, hp, num_layers, num_heads):
    keys = iter(jax.random.split(key, 8 + 8 * num_layers))
    p = {}
    p["cell_lin"] = _lin_init(next(keys), raw_cell, hc)
    p["net_lin"] = _lin_init(next(keys), raw_net, hn)
    p["pin_lin"] = _lin_init(next(keys), raw_pin, hp)
    p["edge_weight_lin"] = _lin_init(next(keys), hp, 1)
    wd, bd = _lin_init(next(keys), 2 * hc, 1)
    wa, ba = _lin_init(next(keys), 2 * hc, 1)
    p["readout_w_t"] = jnp.concatenate([wd, wa], axis=1).T          # [2, 2hc]
    p["readout_b"] = jnp.concatenate([bd, ba]).reshape(2, 1)        # [2, 1]

    head_dim = hc // num_heads
    head_id = np.arange(hc) // head_dim
    sel = (head_id[:, None] == head_id[None, :]).astype(np.float32) * head_dim ** (-0.5)
    p["attn_sel"] = jnp.asarray(sel)                                # [hc, hc]

    layers = []
    for _ in range(num_layers):
        wq, bq = _lin_init(next(keys), hc + hp, hc)
        wk, bk = _lin_init(next(keys), hc + hp, hc)
        wv, bv = _lin_init(next(keys), hc + hp, hc)
        w_qkv = jnp.concatenate([wq, wk, wv], axis=1)               # [hc+hp, 3hc]
        b_qkv = jnp.concatenate([bq, bk, bv], axis=0)               # [3hc]
        w_self, _ = _lin_init(next(keys), hc, hc)
        w_neigh, b_sage = _lin_init(next(keys), hn, hc)
        layers.append({
            "qkv_w_src": w_qkv[:hc],                                # acts on gathered cell feats
            "qkv_w_pin": jnp.concatenate(                           # acts on hpe = [hp | ew]
                [w_qkv[hc:], jnp.zeros((1, 3 * hc), jnp.float32)], axis=0),
            "qkv_b": b_qkv.reshape(1, 3 * hc),
            "sage_w_self": w_self,
            "sage_w_neigh": w_neigh,
            "sage_b": b_sage,
        })
    p["layers"] = layers
    return p


# -----------------------------------------------------------------------------
# PlaceGNN forward (Pallas for the hot path, JAX glue for gathers/reshapes)
# -----------------------------------------------------------------------------
def place_gnn_forward(params, graph, cell_feat, net_feat, pin_feat, cell_size,
                      *, num_heads):
    del num_heads  # encoded in params["attn_sel"]
    n_net = graph["n_net"]
    fanin = graph["fanin"]

    hc = pallas_linear_tanh(cell_feat, *params["cell_lin"])
    hn_feat = pallas_linear_tanh(net_feat, *params["net_lin"])
    hpe = pin_projection_and_edge_weight(
        pin_feat, *params["pin_lin"], *params["edge_weight_lin"])    # [P, Hp+1]
    hp_dim = params["pin_lin"][0].shape[1]
    ew_col = hpe[:, hp_dim:hp_dim + 1]                               # [P, 1]

    hidden = hc.shape[1]
    for layer in params["layers"]:
        # ---- 'pins': HyperEdgeConv (cell -> net); QKV + attention in one kernel ----
        # TODO(synk): row gather hc[pin_src_cell] left to XLA (see header).
        src = hc[graph["pin_src_cell"]]                              # [P, Hc]
        hn_feat = hyperedge_conv(src, hpe, layer["qkv_w_src"], layer["qkv_w_pin"],
                                 layer["qkv_b"], params["attn_sel"],
                                 n_net=n_net, fanin=fanin, hidden=hidden)  # [N_net, Hc]

        # ---- 'pinned': SAGEConv mean (net -> cell, edge-weighted) ----
        neigh = hn_feat[graph["cell_neigh_net"]]                     # [Nc, Dc, Hn]
        ew = ew_col[graph["cell_neigh_edge"]]                        # [Nc, Dc, 1]
        hc = sage_conv(hc, neigh, ew, layer["sage_w_self"], layer["sage_w_neigh"],
                       layer["sage_b"])                              # [Nc, Hc]

    # ---- 'points-to' readout (edges on the LANE axis for dense transcendentals) ----
    fathers = graph["fathers"]
    sons = graph["sons"]
    pair_t = jnp.concatenate([hc[fathers], hc[sons]], axis=1).T      # [2Hc, E]
    bound_t = ((cell_size[fathers] + cell_size[sons]) * 0.5).T       # [2, E]
    edge_dis, edge_angle = edge_readout(pair_t, bound_t,
                                        params["readout_w_t"], params["readout_b"])
    return edge_dis, edge_angle


# -----------------------------------------------------------------------------
# Main
# -----------------------------------------------------------------------------
if __name__ == "__main__":
    # small, forward-consistent sizes
    RAW_CELL, RAW_NET, RAW_PIN = 5, 3, 4
    HC = HN = 32          # hidden cell / net feats (must match for HyperEdgeConv)
    HP = 16               # hidden pin feats
    NUM_HEADS = 4
    NUM_LAYERS = 2
    N_CELL, N_NET, FANIN = 64, 16, 8      # pins: 16 nets * 8 pins = 128 edges
    N_PIN = N_NET * FANIN
    DC = 2                                 # pinned edges per cell (regular)
    N_PT = 32                              # 'points-to' edges

    # synthetic regular graph (deterministic)
    pin_src_cell = np.arange(N_PIN, dtype=np.int32) % N_CELL          # pin e -> src cell
    cell_ids = np.arange(N_CELL, dtype=np.int32)
    cell_neigh_net = np.stack([cell_ids // FANIN, cell_ids // FANIN + 8], axis=1)
    cell_neigh_edge = np.stack([cell_ids, cell_ids + 64], axis=1)     # reverse pin ids
    fathers = np.arange(N_PT, dtype=np.int32) % N_CELL
    sons = (np.arange(N_PT, dtype=np.int32) * 7 + 3) % N_CELL
    graph = dict(
        n_net=N_NET, fanin=FANIN,
        pin_src_cell=jnp.asarray(pin_src_cell),
        cell_neigh_net=jnp.asarray(cell_neigh_net),
        cell_neigh_edge=jnp.asarray(cell_neigh_edge),
        fathers=jnp.asarray(fathers),
        sons=jnp.asarray(sons),
    )

    key = jax.random.PRNGKey(0)
    k_par, k_cf, k_nf, k_pf, k_sz = jax.random.split(key, 5)
    params = init_params(k_par, RAW_CELL, RAW_NET, RAW_PIN, HC, HN, HP,
                         NUM_LAYERS, NUM_HEADS)
    cell_feat = jax.random.normal(k_cf, (N_CELL, RAW_CELL), jnp.float32)
    net_feat = jax.random.normal(k_nf, (N_NET, RAW_NET), jnp.float32)
    pin_feat = jax.random.normal(k_pf, (N_PIN, RAW_PIN), jnp.float32)
    cell_size = jax.random.uniform(k_sz, (N_CELL, 2), jnp.float32, 0.5, 2.0)

    edge_dis, edge_angle = place_gnn_forward(
        params, graph, cell_feat, net_feat, pin_feat, cell_size, num_heads=NUM_HEADS
    )
    jax.block_until_ready((edge_dis, edge_angle))
    assert edge_dis.shape == (N_PT,) and edge_angle.shape == (N_PT,)
    assert bool(jnp.all(jnp.isfinite(edge_dis))) and bool(jnp.all(jnp.isfinite(edge_angle)))
    print("KERNEL_OK")
</pallas_src>

<mosaic_0001>
module attributes {stable_mosaic.version = 11 : i64} {
  func.func @_linear_tanh_kernel(%arg0: i32, %arg1: memref<32x5xf32, #tpu.memory_space<vmem>>, %arg2: memref<5x32xf32, #tpu.memory_space<vmem>>, %arg3: memref<1x32xf32, #tpu.memory_space<vmem>>, %arg4: memref<32x32xf32, #tpu.memory_space<vmem>>) attributes {dimension_semantics = [#tpu.dimension_semantics<parallel>], iteration_bounds = array<i64: 2>, scalar_prefetch = 0 : i64, scratch_operands = 0 : i64, tpu.core_type = #tpu.core_type<tc>, window_params = [{transform_indices = @transform_0, window_bounds = array<i64: 32, 5>}, {pipeline_mode = #tpu.pipeline_mode<synchronous>, transform_indices = @transform_1, window_bounds = array<i64: 5, 32>}, {pipeline_mode = #tpu.pipeline_mode<synchronous>, transform_indices = @transform_2, window_bounds = array<i64: 1, 32>}, {transform_indices = @transform_3, window_bounds = array<i64: 32, 32>}]} {
    %c0 = arith.constant 0 : index
    %c0_0 = arith.constant 0 : index
    %0 = vector.load %arg1[%c0, %c0_0] : memref<32x5xf32, #tpu.memory_space<vmem>>, vector<32x5xf32>
    %1 = arith.truncf %0 : vector<32x5xf32> to vector<32x5xbf16>
    %c0_1 = arith.constant 0 : index
    %c0_2 = arith.constant 0 : index
    %2 = vector.load %arg2[%c0_1, %c0_2] : memref<5x32xf32, #tpu.memory_space<vmem>>, vector<5x32xf32>
    %3 = arith.truncf %2 : vector<5x32xf32> to vector<5x32xbf16>
    %cst = arith.constant dense<0.000000e+00> : vector<32x32xf32>
    %4 = tpu.matmul %1, %3, %cst {dimension_numbers = #tpu.dot_dimension_numbers<[1], [0], [0], [1], [0, 0, 1, 1], [], []>} : vector<32x5xbf16>, vector<5x32xbf16>, vector<32x32xf32> -> vector<32x32xf32>
    %c0_3 = arith.constant 0 : index
    %c0_4 = arith.constant 0 : index
    %5 = vector.load %arg3[%c0_3, %c0_4] : memref<1x32xf32, #tpu.memory_space<vmem>>, vector<1x32xf32>
    %6 = vector.broadcast %5 : vector<1x32xf32> to vector<32x32xf32>
    %7 = arith.addf %4, %6 : vector<32x32xf32>
    %8 = math.tanh %7 : vector<32x32xf32>
    %c0_5 = arith.constant 0 : index
    %c0_6 = arith.constant 0 : index
    %9 = vector.load %arg4[%c0_5, %c0_6] : memref<32x32xf32, #tpu.memory_space<vmem>>, vector<32x32xf32>
    tpu.vector_store %arg4[%c0_5, %c0_6], %8 {strides = array<i32>} : memref<32x32xf32, #tpu.memory_space<vmem>>, vector<32x32xf32>,
    return
  }
  func.func @transform_0(%arg0: i32) -> (i32, i32) {
    %c0_i32 = arith.constant 0 : i32
    %c0_i32_0 = arith.constant 0 : i32
    return %arg0, %c0_i32 : i32, i32
  }
  func.func @transform_1(%arg0: i32) -> (i32, i32) {
    %c0_i32 = arith.constant 0 : i32
    %c0_i32_0 = arith.constant 0 : i32
    %c0_i32_1 = arith.constant 0 : i32
    return %c0_i32, %c0_i32_0 : i32, i32
  }
  func.func @transform_2(%arg0: i32) -> (i32, i32) {
    %c0_i32 = arith.constant 0 : i32
    %c0_i32_0 = arith.constant 0 : i32
    %c0_i32_1 = arith.constant 0 : i32
    return %c0_i32, %c0_i32_0 : i32, i32
  }
  func.func @transform_3(%arg0: i32) -> (i32, i32) {
    %c0_i32 = arith.constant 0 : i32
    %c0_i32_0 = arith.constant 0 : i32
    return %arg0, %c0_i32 : i32, i32
  }
}

</mosaic_0001>

<llo_original>
// kernel: tpu_custom_call.1
$region0: #{tpu_custom_call.1}
  #allocation0 [shape = 'u32[]', space=smem, size = 0x4, offset = 0x4, fixed_abs, tag = 'smem constant byte address 0x4 - core index']
  #allocation1 [shape = 'u32[72,128]{1,0:T(1,128)}', space=vmem, size = 0x9000, scoped, tag = 'internal scratch']
  %s0 = inlined_call_operand.vmem [shape: f32[64,5], index: 0, kind: input, shape index: {}]
  %s1 = inlined_call_operand.vmem [shape: f32[5,32], index: 1, kind: input, shape index: {}]
  %s2 = inlined_call_operand.vmem [shape: f32[1,32], index: 2, kind: input, shape index: {}]
  %s3 = inlined_call_operand.vmem [shape: f32[64,32], index: 3, kind: output, shape index: {}]
  %s4 = sld [smem:[#allocation0]]
  $region45: #{tpu_custom_call.1} parent=0
    _
  %s6 = ssub.s32 1, %s4
  %s7 = scalar_select 0, %s6, %s4
  loop: start=0, step=1, limit=4
  $region2: #{tpu_custom_call.1} parent=0 // loop_pre_header
    _
  $region3: #{tpu_custom_call.1} parent=0 // loop_header
    %s9 = sphi 0, %s13
    %p10 = scmp.ge.s32.totalorder %s9, 4
    %s19 = sphi 0, %s21
    %s22 = sphi 0, %s19
    %s23 = sphi 0, %s22
    %s39 = sphi 0, %s23
    %s43 = sphi 0, %s43
    %s45 = sphi 0, %s43
    %s46 = sphi 0, %s45
    %s60 = sphi 0, %s46
    %s64 = sphi 0, %s64
    %s66 = sphi 0, %s64
    %s67 = sphi 0, %s66
    %s81 = sphi 0, %s67
    %s87 = sphi 0, %s89
    %s90 = sphi 0, %s87
    %s91 = sphi 0, %s90
    %s107 = sphi 0, %s91
  $region4: #{tpu_custom_call.1} parent=0 // loop_header_branch
    %12 = sbr.rel (%p10) target = $region8
  $region5: #{tpu_custom_call.1} parent=0 // loop_body
    %s14 = ssub.s32 %s9, 1
    %s15 = ssub.s32 %s9, 2
    %s16 = sadd.s32 %s9, 1
    %s17 = ssub.s32 %s9, %s16
    %p18 = scmp.eq.s32.totalorder %s17, 0
    %s20 = sadd.s32 %s19, 1
    %s21 = scalar_select %p18, %s19, %s20
    %p24 = pneg %p18
    %p25 = scmp.eq.s32.totalorder %s9, 1
    %p26 = por %p24, %p25
    %p27 = scmp.ne.s32.totalorder %s19, %s22
    %p28 = scmp.eq.s32.totalorder %s9, 0
    %p29 = por %p27, %p28
    %p30 = scmp.ne.s32.totalorder %s19, %s22
    %p31 = scmp.eq.s32.totalorder %s14, 1
    %p32 = por %p30, %p31
    %p33 = scmp.ne.s32.totalorder %s22, %s23
    %p34 = scmp.eq.s32.totalorder %s14, 0
    %p35 = por %p33, %p34
    %p36 = scmp.ne.s32.totalorder %s22, %s23
    %p37 = scmp.eq.s32.totalorder %s15, 1
    %p38 = por %p36, %p37
    %p40 = scmp.ne.s32.totalorder %s23, %s39
    %p41 = scmp.eq.s32.totalorder %s15, 0
    %p42 = por %p40, %p41
    %s44 = sadd.s32 %s43, 1
    %p47 = scmp.eq.s32.totalorder %s9, 1
    %p48 = scmp.ne.s32.totalorder %s43, %s45
    %p49 = scmp.eq.s32.totalorder %s9, 0
    %p50 = por %p48, %p49
    %p51 = scmp.ne.s32.totalorder %s43, %s45
    %p52 = scmp.eq.s32.totalorder %s14, 1
    %p53 = por %p51, %p52
    %p54 = scmp.ne.s32.totalorder %s45, %s46
    %p55 = scmp.eq.s32.totalorder %s14, 0
    %p56 = por %p54, %p55
    %p57 = scmp.ne.s32.totalorder %s45, %s46
    %p58 = scmp.eq.s32.totalorder %s15, 1
    %p59 = por %p57, %p58
    %p61 = scmp.ne.s32.totalorder %s46, %s60
    %p62 = scmp.eq.s32.totalorder %s15, 0
    %p63 = por %p61, %p62
    %s65 = sadd.s32 %s64, 1
    %p68 = scmp.eq.s32.totalorder %s9, 1
    %p69 = scmp.ne.s32.totalorder %s64, %s66
    %p70 = scmp.eq.s32.totalorder %s9, 0
    %p71 = por %p69, %p70
    %p72 = scmp.ne.s32.totalorder %s64, %s66
    %p73 = scmp.eq.s32.totalorder %s14, 1
    %p74 = por %p72, %p73
    %p75 = scmp.ne.s32.totalorder %s66, %s67
    %p76 = scmp.eq.s32.totalorder %s14, 0
    %p77 = por %p75, %p76
    %p78 = scmp.ne.s32.totalorder %s66, %s67
    %p79 = scmp.eq.s32.totalorder %s15, 1
    %p80 = por %p78, %p79
    %p82 = scmp.ne.s32.totalorder %s67, %s81
    %p83 = scmp.eq.s32.totalorder %s15, 0
    %p84 = por %p82, %p83
    %s85 = ssub.s32 %s9, %s16
    %p86 = scmp.eq.s32.totalorder %s85, 0
    %s88 = sadd.s32 %s87, 1
    %s89 = scalar_select %p86, %s87, %s88
    %p92 = pneg %p86
    %p93 = scmp.eq.s32.totalorder %s9, 1
    %p94 = por %p92, %p93
    %p95 = scmp.ne.s32.totalorder %s87, %s90
    %p96 = scmp.eq.s32.totalorder %s9, 0
    %p97 = por %p95, %p96
    %p98 = scmp.ne.s32.totalorder %s87, %s90
    %p99 = scmp.eq.s32.totalorder %s14, 1
    %p100 = por %p98, %p99
    %p101 = scmp.ne.s32.totalorder %s90, %s91
    %p102 = scmp.eq.s32.totalorder %s14, 0
    %p103 = por %p101, %p102
    %p104 = scmp.ne.s32.totalorder %s90, %s91
    %p105 = scmp.eq.s32.totalorder %s15, 1
    %p106 = por %p104, %p105
    %p108 = scmp.ne.s32.totalorder %s91, %s107
    %p109 = scmp.eq.s32.totalorder %s15, 0
    %p110 = por %p108, %p109
    %p111 = scmp.le.s32.totalorder 1, %s9
    %p112 = scmp.lt.s32.totalorder %s9, 3
    %p113 = pnand %p111, %p112
    %p114 = pneg %p113
    // Predicated region
    $region9: #{tpu_custom_call.1} parent=5 // pred_check
      _
    $region10: #{tpu_custom_call.1} parent=5 // pred_check_branch
      %116 = sbr.rel (%p113) target = $region12
    $region11: #{tpu_custom_call.1} parent=5 // pred_region
      %s117 = ssub.s32 %s9, 1
      // Predicated region
      $region13: #{tpu_custom_call.1} parent=11 // pred_check
        %p118 = pneg %p56
      $region14: #{tpu_custom_call.1} parent=11 // pred_check_branch
        %120 = sbr.rel (%p118) target = $region16
      $region15: #{tpu_custom_call.1} parent=11 // pred_region
        _
      $region16: #{tpu_custom_call.1} parent=11 // pred_fallthru
        _
      // Predicated region
      $region17: #{tpu_custom_call.1} parent=11 // pred_check
        %p121 = pneg %p77
      $region18: #{tpu_custom_call.1} parent=11 // pred_check_branch
        %123 = sbr.rel (%p121) target = $region20
      $region19: #{tpu_custom_call.1} parent=11 // pred_region
        _
      $region20: #{tpu_custom_call.1} parent=11 // pred_fallthru
        _
    $region12: #{tpu_custom_call.1} parent=5 // pred_fallthru
      _
    %p124 = scmp.lt.s32.totalorder %s9, 2
    // Predicated region
    $region21: #{tpu_custom_call.1} parent=5 // pred_check
      %p125 = pneg %p124
    $region22: #{tpu_custom_call.1} parent=5 // pred_check_branch
      %127 = sbr.rel (%p125) target = $region24
    $region23: #{tpu_custom_call.1} parent=5 // pred_region
      // Predicated region
      $region25: #{tpu_custom_call.1} parent=23 // pred_check
        %p128 = pneg %p29
      $region26: #{tpu_custom_call.1} parent=23 // pred_check_branch
        %130 = sbr.rel (%p128) target = $region28
      $region27: #{tpu_custom_call.1} parent=23 // pred_region
        %s131 = smul.u32 4, %s9
        %p132 = scmp.lt.s32.totalorder %s131, 7
        %s133 = scalar_select %p132, %s131, 7
        %s134 = smul.addr %s133, 8
        %s135 = scalar_lea.vmem %s0, %s134
        %s136 = smul.u32 4, %s9
      $region28: #{tpu_custom_call.1} parent=23 // pred_fallthru
        _
    $region24: #{tpu_custom_call.1} parent=5 // pred_fallthru
      _
    %p137 = scmp.le.s32.totalorder 1, %s9
    %p138 = scmp.lt.s32.totalorder %s9, 3
    %p139 = pnand %p137, %p138
    %p140 = pneg %p139
    // Predicated region
    $region29: #{tpu_custom_call.1} parent=5 // pred_check
      _
    $region30: #{tpu_custom_call.1} parent=5 // pred_check_branch
      %142 = sbr.rel (%p139) target = $region32
    $region31: #{tpu_custom_call.1} parent=5 // pred_region
      %s143 = ssub.s32 %s9, 1
      %s144 = smul.u32 4, %s14
      %p145 = scmp.lt.s32.totalorder %s144, 7
      %s146 = scalar_select %p145, %s144, 7
      %s147 = smul.addr %s146, 8
      %s148 = scalar_lea.vmem %s0, %s147
      %p149 = pneg %p35
      %p150 = pneg %p32
      %p151 = pneg %p56
      %p152 = pneg %p53
      %p153 = pneg %p77
      %p154 = pneg %p74
      %p155 = pneg %p103
      %p156 = pneg %p100
      %s157 = smul.u32 4, %s14
      %p158 = scmp.lt.s32.totalorder %s157, 7
      %s159 = scalar_select %p158, %s157, 7
      %s160 = smul.addr %s159, 8
      %s161 = scalar_lea.vmem %s3, %s160
      %s162 = smul.u32 4, %s14
      %p163 = scmp.lt.s32.totalorder %s162, 7
      %s164 = scalar_select %p163, %s162, 7
      %s165 = smul.addr %s164, 8
      %s166 = scalar_lea.vmem %s0, %s165
      %s167 = smul.u32 4, %s14
      %s168 = smul.u32 4, %s14
      %p169 = scmp.lt.s32.totalorder %s168, 7
      %s170 = scalar_select %p169, %s168, 7
      %s171 = smul.addr %s170, 8
      %s172 = scalar_lea.vmem %s3, %s171
      %s173 = smul.u32 4, %s14
      %v175 = vld [vmem:[%s166] sm:$0xff]
      %v176 = vld [vmem:[%s166 + $0x8] sm:$0xff]
      %v177 = vld [vmem:[%s166 + $0x10] sm:$0xff]
      %v178 = vld [vmem:[%s166 + $0x18] sm:$0xff]
      %v179 = vpack.c.bf16 %v176, %v175
      %v180 = vpack.c.bf16 %v178, %v177
      %v181 = vld [vmem:[%s1] sm:$0x1f]
      %v182 = vpack.c.bf16 %v181, %v181
      %v183 = vld [vmem:[%s2] sm:$0x1]
      %v185 = vperm.slane %v183, 0
      %vm187 = vcmask 39936
      %v189 = vsel %vm187, %v179, 0
      %v192 = vsel %vm187, %v180, 0
      %vm194 = vcmask 1041408
      %vm195 = vcmask 1042432
      %v196 = vsel %vm194, 4294967295, 65535
      %v197 = vsel %vm195, %v196, 0
      %v199 = vand.u32 %v182, %v197
      %201 = vmatpush.bf16.msra.mxu0 0
      %202 = vmatpush.bf16.msra.mxu0 0
      %203 = vmatpush.bf16.msra.mxu0 0
      %204 = vmatpush.bf16.msra.mxu0 0
      %205 = vmatpush.bf16.msra.mxu0 0
      %206 = vmatpush.bf16.msra.mxu0 0
      %207 = vmatpush.bf16.msra.mxu0 0
      %208 = vmatpush.bf16.msra.mxu0 %v199
      %209 = vmatmul.bf16.gmra.mxu0 %v189
      %v210 = vpop.f32.mrf.mxu0
      %v211 = vadd.f32 %v185, %v210
      %v212 = vpop.f32.mrf.mxu0
      %v213 = vadd.f32 %v185, %v212
      %214 = vmatmul.bf16.gmra.mxu0 %v192
      %v215 = vpop.f32.mrf.mxu0
      %v216 = vadd.f32 %v185, %v215
      %v217 = vpop.f32.mrf.mxu0
      %v218 = vadd.f32 %v185, %v217
      %219 = vdwg.mxu0
      %v220 = vtanh.pop %v211
      %v221 = vtanh.pop %v213
      %v222 = vtanh.pop %v216
      %v223 = vtanh.pop %v218
      %vm224 = vcmask 261120
      %225 = vst.msk [vmem:[%s172] sm:$0xff] %vm224, %v220
      %226 = vst.msk [vmem:[%s172 + $0x8] sm:$0xff] %vm224, %v221
      %227 = vst.msk [vmem:[%s172 + $0x10] sm:$0xff] %vm224, %v222
      %228 = vst.msk [vmem:[%s172 + $0x18] sm:$0xff] %vm224, %v223
      %s229 = smul.u32 4, %s14
      %p230 = scmp.lt.s32.totalorder %s229, 7
      %s231 = scalar_select %p230, %s229, 7
      %s232 = smul.addr %s231, 8
      %s233 = scalar_lea.vmem %s3, %s232
      // Predicated region
      $region33: #{tpu_custom_call.1} parent=31 // pred_check
        %p234 = pneg %p100
      $region34: #{tpu_custom_call.1} parent=31 // pred_check_branch
        %236 = sbr.rel (%p234) target = $region36
      $region35: #{tpu_custom_call.1} parent=31 // pred_region
        %s237 = smul.u32 4, %s14
      $region36: #{tpu_custom_call.1} parent=31 // pred_fallthru
        _
    $region32: #{tpu_custom_call.1} parent=5 // pred_fallthru
      _
    %p238 = scmp.le.s32.totalorder 2, %s9
    // Predicated region
    $region37: #{tpu_custom_call.1} parent=5 // pred_check
      %p239 = pneg %p238
    $region38: #{tpu_custom_call.1} parent=5 // pred_check_branch
      %241 = sbr.rel (%p239) target = $region40
    $region39: #{tpu_custom_call.1} parent=5 // pred_region
      %s242 = ssub.s32 %s9, 2
      // Predicated region
      $region41: #{tpu_custom_call.1} parent=39 // pred_check
        %p243 = pneg %p106
      $region42: #{tpu_custom_call.1} parent=39 // pred_check_branch
        %245 = sbr.rel (%p243) target = $region44
      $region43: #{tpu_custom_call.1} parent=39 // pred_region
        %s246 = smul.u32 4, %s15
        %p247 = scmp.lt.s32.totalorder %s246, 7
        %s248 = scalar_select %p247, %s246, 7
        %s249 = smul.addr %s248, 8
        %s250 = scalar_lea.vmem %s3, %s249
      $region44: #{tpu_custom_call.1} parent=39 // pred_fallthru
        _
    $region40: #{tpu_custom_call.1} parent=5 // pred_fallthru
      _
  $region6: #{tpu_custom_call.1} parent=0 // loop_footer
    %s13 = sadd.s32 1, %s9
  $region7: #{tpu_custom_call.1} parent=0 // loop_footer_branch
    %8 = sbr.rel target = $region3
  $region8: #{tpu_custom_call.1} parent=0 // loop_exit
    _

</llo_original>
